<compile_context>
chip_gen: v7x
topology: tpu7x:2x2x1
jax: 0.10.0
libtpu: 0.0.40
codegen_flags: <defaults>
</compile_context>

<pallas_src>
import functools

import jax
import jax.numpy as jnp
from jax.experimental import pallas as pl
from jax.experimental.pallas import tpu as pltpu


# ---------------- in-kernel math helpers (traced into the kernel) -----------

def _leaky(x):  # LeakyReLU(0.2)
    return jnp.where(x > 0, x, 0.2 * x)


def _log_softmax(x):  # over dim=1 of a 2D array
    s = x - jnp.max(x, axis=1, keepdims=True)
    return s - jnp.log(jnp.sum(jnp.exp(s), axis=1, keepdims=True))


# ------------------------------- Pallas kernel -------------------------------

def embedding_fwd_kernel(ce_ratio, distill_ratio, contrast_ratio,
                         # inputs (all VMEM)
                         feat_ref,            # (B, res)
                         w1p_ref,             # (res, 2*hid)   [lw1 | w1]
                         w2bd_ref,            # (2*hid, 2*outz) blockdiag(lw2, w2)
                         w3bd_ref,            # (2*outz, 2*cls) blockdiag(lw3, w3)
                         bias_ref,            # (3, BW) rows: b1 | b2 | b3 packed
                         cnT_ref,             # (outz, nseen)  normalized, /T, transposed
                         lab_ref,             # (B, ncls) one-hot labels
                         mask_ref,            # (B, nseen) one-hot local labels
                         # output (VMEM, lane-dense)
                         out_ref):            # (B, OUT_W) = [out_z | out_z_norm | loss]
    B = feat_ref.shape[0]
    H2 = w1p_ref.shape[1]          # 2 * hidden
    O2 = w2bd_ref.shape[1]         # 2 * outz
    C2 = w3bd_ref.shape[1]         # 2 * class_num
    outz, ncls = O2 // 2, C2 // 2

    f = feat_ref[...]
    b1 = bias_ref[0:1, :H2]
    b2 = bias_ref[1:2, :O2]
    b3 = bias_ref[2:3, :C2]

    # ---- fused branches ----
    # layer 1 (both branches use LeakyReLU(0.2)):   [h_left | emb_right]
    h_pack = _leaky(jnp.dot(f, w1p_ref[...], preferred_element_type=jnp.float32) + b1)
    # layer 2 (block-diagonal weights):             [z_left | out_z_right]
    z_pack = jnp.dot(h_pack, w2bd_ref[...], preferred_element_type=jnp.float32) + b2
    # layer 3 (block-diagonal weights):             [left_logits | right_logits]
    lg_pack = jnp.dot(z_pack, w3bd_ref[...], preferred_element_type=jnp.float32) + b3

    out_z = z_pack[:, outz:]
    nrm = jnp.sqrt(jnp.sum(out_z * out_z, axis=1, keepdims=True))
    out_z_norm = out_z / jnp.maximum(nrm, 1e-12)         # exact: it is an output

    left_logits = lg_pack[:, :ncls]
    right_logits = lg_pack[:, ncls:]
    stacked = jnp.concatenate([left_logits, right_logits], axis=0)   # (2B, ncls)

    # ---- CE(left) + CE(right): one log_softmax over stacked rows ----
    ls_raw = _log_softmax(stacked)
    lab = lab_ref[...]
    lab2 = jnp.concatenate([lab, lab], axis=0)
    ce_sum = -jnp.sum(lab2 * ls_raw) / B                 # == ce_left + ce_right

    # ---- kd_loss = MultiClassCrossEntropy(right_logits, left_logits) ----
    snrm = jnp.sqrt(jnp.sum(stacked * stacked, axis=1, keepdims=True))
    stacked_n = stacked * pl.reciprocal(jnp.maximum(snrm, 1e-12), approx=True)
    ls_n = _log_softmax(stacked_n)                       # one chain for both halves
    kd_terms = jnp.sum(ls_n[B:, :] * jnp.exp(ls_n[:B, :]),   # softmax = exp(logsoftmax)
                       axis=1, keepdims=True)
    kd_loss = -jnp.mean(kd_terms)

    loss_cls = ce_ratio * ce_sum + distill_ratio * kd_loss

    # ---- contrastive loss against pre-normalized / pre-scaled centers ----
    adc = jnp.dot(out_z_norm, cnT_ref[...], preferred_element_type=jnp.float32)
    lg = adc - jnp.max(adc, axis=1, keepdims=True)
    log_prob = lg - jnp.log(jnp.sum(jnp.exp(lg), axis=1, keepdims=True))
    mask = mask_ref[...]
    msum = jnp.maximum(jnp.sum(mask, axis=1, keepdims=True), 1.0)   # NaN guard
    mean_log_prob_pos = (jnp.sum(mask * log_prob, axis=1, keepdims=True)
                         * pl.reciprocal(msum, approx=True))
    loss_con = -jnp.mean(mean_log_prob_pos)

    total_loss = loss_cls + contrast_ratio * loss_con

    # ---- single lane-dense store: [out_z | out_z_norm | broadcast(loss)] ----
    pad = out_ref.shape[1] - 2 * outz
    loss_block = total_loss + jnp.zeros((B, pad), jnp.float32)
    out_ref[...] = jnp.concatenate([out_z, out_z_norm, loss_block], axis=1)


# ------------------------------- wrapper --------------------------------------

def _block_diag(a, b):
    za = jnp.zeros((a.shape[0], b.shape[1]), a.dtype)
    zb = jnp.zeros((b.shape[0], a.shape[1]), a.dtype)
    return jnp.concatenate([jnp.concatenate([a, za], axis=1),
                            jnp.concatenate([zb, b], axis=1)], axis=0)


def embedding_model_forward(features, label, local_label, params, center, opt):
    """Returns (out_z_norm, out_z, all_loss) like Embedding_model.forward."""
    B = features.shape[0]
    hid = params["w1"].shape[1]
    outz = params["w2"].shape[1]
    ncls = params["w3"].shape[1]
    nseen = center.shape[0]

    # ---- wrapper-side packing (free glue; constants per forward) ----
    w1p = jnp.concatenate([params["lw1"], params["w1"]], axis=1)      # (res, 2h)
    w2bd = _block_diag(params["lw2"], params["w2"])                   # (2h, 2o)
    w3bd = _block_diag(params["lw3"], params["w3"])                   # (2o, 2c)

    BW = max(2 * hid, 2 * outz, 2 * ncls)

    def _padrow(b):
        return jnp.pad(b, ((0, 0), (0, BW - b.shape[1])))

    bias_pack = jnp.concatenate(
        [_padrow(jnp.concatenate([params["lb1"], params["b1"]], axis=1)),
         _padrow(jnp.concatenate([params["lb2"], params["b2"]], axis=1)),
         _padrow(jnp.concatenate([params["lb3"], params["b3"]], axis=1))],
        axis=0)                                                       # (3, BW)

    # centers: L2-normalize, fold in 1/temperature, transpose -> kernel matmul only
    cn = center / jnp.maximum(
        jnp.sqrt(jnp.sum(center * center, axis=1, keepdims=True)), 1e-12)
    cnT = (cn / float(opt["temperature"])).T                          # (outz, nseen)

    label_1h = jax.nn.one_hot(label, ncls, dtype=jnp.float32)         # glue
    mask = jax.nn.one_hot(local_label, nseen, dtype=jnp.float32)      # glue

    OUT_W = ((2 * outz + 1 + 127) // 128) * 128                       # lane-dense width

    kernel = functools.partial(
        embedding_fwd_kernel,
        float(opt["ce_ratio"]), float(opt["distill_ratio"]),
        float(opt["contrast_ratio"]))

    inputs = (features, w1p, w2bd, w3bd, bias_pack, cnT, label_1h, mask)

    out_pack = pl.pallas_call(
        kernel,
        out_shape=jax.ShapeDtypeStruct((B, OUT_W), jnp.float32),
        in_specs=[pl.BlockSpec(memory_space=pltpu.MemorySpace.VMEM)] * len(inputs),
        out_specs=pl.BlockSpec(memory_space=pltpu.MemorySpace.VMEM),
    )(*inputs)

    out_z = out_pack[:, :outz]
    out_z_norm = out_pack[:, outz:2 * outz]
    all_loss = out_pack[0, 2 * outz]
    return out_z_norm, out_z, all_loss


# --------------------------- deterministic init --------------------------------

def init_params(key, res, hid, outz, ncls):
    ks = jax.random.split(key, 6)

    def lin(k, fan_in, fan_out):
        w = 0.02 * jax.random.normal(k, (fan_in, fan_out), jnp.float32)
        b = jnp.zeros((1, fan_out), jnp.float32)
        return w, b

    p = {}
    p["lw1"], p["lb1"] = lin(ks[0], res, hid)    # left[0]
    p["lw2"], p["lb2"] = lin(ks[1], hid, outz)   # left[2]
    p["lw3"], p["lb3"] = lin(ks[2], outz, ncls)  # left[3]
    p["w1"], p["b1"] = lin(ks[3], res, hid)      # fc1
    p["w2"], p["b2"] = lin(ks[4], hid, outz)     # fc2
    p["w3"], p["b3"] = lin(ks[5], outz, ncls)    # fc3
    return p


def get_center(params, tr_cls_centroid):
    # init-time glue: center = fc2(lrelu(fc1(centroid))), detached
    e = tr_cls_centroid @ params["w1"] + params["b1"]
    e = jnp.where(e > 0, e, 0.2 * e)
    return e @ params["w2"] + params["b2"]


# ------------------------------------ main -------------------------------------

if __name__ == "__main__":
    B, resSize, hidden, outzSize, class_num, seen_num = 8, 64, 32, 32, 16, 16

    opt = dict(temperature=0.1, ce_ratio=1.0, distill_ratio=0.5,
               contrast_ratio=0.5, mad=0.9)

    key = jax.random.PRNGKey(0)
    kp, kf, kc, kl, kll = jax.random.split(key, 5)

    params = init_params(kp, resSize, hidden, outzSize, class_num)
    features = jax.random.normal(kf, (B, resSize), jnp.float32)
    tr_cls_centroid = jax.random.normal(kc, (seen_num, resSize), jnp.float32)
    label = jax.random.randint(kl, (B,), 0, class_num)
    local_label = jax.random.randint(kll, (B,), 0, seen_num)

    center = get_center(params, tr_cls_centroid)

    out_z_norm, out_z, all_loss = embedding_model_forward(
        features, label, local_label, params, center, opt)
    jax.block_until_ready((out_z_norm, out_z, all_loss))

    assert out_z_norm.shape == (B, outzSize)
    assert out_z.shape == (B, outzSize)
    assert all_loss.shape == ()
    assert bool(jnp.isfinite(all_loss))
    print("KERNEL_OK")
</pallas_src>

<mosaic_0001>
module attributes {stable_mosaic.version = 11 : i64} {
  func.func @embedding_fwd_kernel(%arg0: memref<8x64xf32, #tpu.memory_space<vmem>>, %arg1: memref<64x64xf32, #tpu.memory_space<vmem>>, %arg2: memref<64x64xf32, #tpu.memory_space<vmem>>, %arg3: memref<64x32xf32, #tpu.memory_space<vmem>>, %arg4: memref<3x64xf32, #tpu.memory_space<vmem>>, %arg5: memref<32x16xf32, #tpu.memory_space<vmem>>, %arg6: memref<8x16xf32, #tpu.memory_space<vmem>>, %arg7: memref<8x16xf32, #tpu.memory_space<vmem>>, %arg8: memref<8x128xf32, #tpu.memory_space<vmem>>) attributes {dimension_semantics = [], scalar_prefetch = 0 : i64, scratch_operands = 0 : i64, tpu.core_type = #tpu.core_type<tc>} {
    %c0 = arith.constant 0 : index
    %c0_0 = arith.constant 0 : index
    %0 = vector.load %arg0[%c0, %c0_0] : memref<8x64xf32, #tpu.memory_space<vmem>>, vector<8x64xf32>
    %c0_1 = arith.constant 0 : index
    %c0_2 = arith.constant 0 : index
    %1 = vector.load %arg4[%c0_1, %c0_2] : memref<3x64xf32, #tpu.memory_space<vmem>>, vector<1x64xf32>
    %c1 = arith.constant 1 : index
    %c0_3 = arith.constant 0 : index
    %2 = vector.load %arg4[%c1, %c0_3] : memref<3x64xf32, #tpu.memory_space<vmem>>, vector<1x64xf32>
    %c2 = arith.constant 2 : index
    %c0_4 = arith.constant 0 : index
    %3 = vector.load %arg4[%c2, %c0_4] : memref<3x64xf32, #tpu.memory_space<vmem>>, vector<1x32xf32>
    %c0_5 = arith.constant 0 : index
    %c0_6 = arith.constant 0 : index
    %4 = vector.load %arg1[%c0_5, %c0_6] : memref<64x64xf32, #tpu.memory_space<vmem>>, vector<64x64xf32>
    %cst = arith.constant dense<0.000000e+00> : vector<8x64xf32>
    %5 = tpu.matmul %0, %4, %cst {dimension_numbers = #tpu.dot_dimension_numbers<[1], [0], [0], [1], [0, 0, 1, 1], [], []>} : vector<8x64xf32>, vector<64x64xf32>, vector<8x64xf32> -> vector<8x64xf32>
    %6 = vector.broadcast %1 : vector<1x64xf32> to vector<8x64xf32>
    %7 = arith.addf %5, %6 : vector<8x64xf32>
    %cst_7 = arith.constant 0.000000e+00 : f32
    %8 = vector.broadcast %cst_7 : f32 to vector<8x64xf32>
    %9 = arith.cmpf ogt, %7, %8 : vector<8x64xf32>
    %cst_8 = arith.constant 2.000000e-01 : f32
    %10 = vector.broadcast %cst_8 : f32 to vector<8x64xf32>
    %11 = arith.mulf %10, %7 : vector<8x64xf32>
    %12 = arith.select %9, %7, %11 : vector<8x64xi1>, vector<8x64xf32>
    %c0_9 = arith.constant 0 : index
    %c0_10 = arith.constant 0 : index
    %13 = vector.load %arg2[%c0_9, %c0_10] : memref<64x64xf32, #tpu.memory_space<vmem>>, vector<64x64xf32>
    %cst_11 = arith.constant dense<0.000000e+00> : vector<8x64xf32>
    %14 = tpu.matmul %12, %13, %cst_11 {dimension_numbers = #tpu.dot_dimension_numbers<[1], [0], [0], [1], [0, 0, 1, 1], [], []>} : vector<8x64xf32>, vector<64x64xf32>, vector<8x64xf32> -> vector<8x64xf32>
    %15 = vector.broadcast %2 : vector<1x64xf32> to vector<8x64xf32>
    %16 = arith.addf %14, %15 : vector<8x64xf32>
    %c0_12 = arith.constant 0 : index
    %c0_13 = arith.constant 0 : index
    %17 = vector.load %arg3[%c0_12, %c0_13] : memref<64x32xf32, #tpu.memory_space<vmem>>, vector<64x32xf32>
    %cst_14 = arith.constant dense<0.000000e+00> : vector<8x32xf32>
    %18 = tpu.matmul %16, %17, %cst_14 {dimension_numbers = #tpu.dot_dimension_numbers<[1], [0], [0], [1], [0, 0, 1, 1], [], []>} : vector<8x64xf32>, vector<64x32xf32>, vector<8x32xf32> -> vector<8x32xf32>
    %19 = vector.broadcast %3 : vector<1x32xf32> to vector<8x32xf32>
    %20 = arith.addf %18, %19 : vector<8x32xf32>
    %21 = vector.extract_strided_slice %16 {offsets = [0, 32], sizes = [8, 32], strides = [1, 1]} : vector<8x64xf32> to vector<8x32xf32>
    %22 = arith.mulf %21, %21 : vector<8x32xf32>
    %cst_15 = arith.constant dense<0.000000e+00> : vector<8xf32>
    %23 = vector.multi_reduction <add>, %22, %cst_15 [1] : vector<8x32xf32> to vector<8xf32>
    %24 = vector.shape_cast %23 : vector<8xf32> to vector<8x1xf32>
    %25 = math.sqrt %24 : vector<8x1xf32>
    %cst_16 = arith.constant 9.99999996E-13 : f32
    %26 = vector.broadcast %cst_16 : f32 to vector<8x1xf32>
    %27 = arith.maximumf %25, %26 : vector<8x1xf32>
    %28 = vector.broadcast %27 : vector<8x1xf32> to vector<8x32xf32>
    %29 = arith.divf %21, %28 : vector<8x32xf32>
    %30 = vector.extract_strided_slice %20 {offsets = [0, 0], sizes = [8, 16], strides = [1, 1]} : vector<8x32xf32> to vector<8x16xf32>
    %31 = vector.extract_strided_slice %20 {offsets = [0, 16], sizes = [8, 16], strides = [1, 1]} : vector<8x32xf32> to vector<8x16xf32>
    %32 = tpu.concatenate %30, %31 in 0 : vector<8x16xf32>, vector<8x16xf32> -> vector<16x16xf32>
    %cst_17 = arith.constant dense<0xFF800000> : vector<16xf32>
    %33 = vector.multi_reduction <maximumf>, %32, %cst_17 [1] : vector<16x16xf32> to vector<16xf32>
    %34 = vector.shape_cast %33 : vector<16xf32> to vector<16x1xf32>
    %35 = vector.broadcast %34 : vector<16x1xf32> to vector<16x16xf32>
    %36 = arith.subf %32, %35 : vector<16x16xf32>
    %37 = math.exp %36 : vector<16x16xf32>
    %cst_18 = arith.constant dense<0.000000e+00> : vector<16xf32>
    %38 = vector.multi_reduction <add>, %37, %cst_18 [1] : vector<16x16xf32> to vector<16xf32>
    %39 = vector.shape_cast %38 : vector<16xf32> to vector<16x1xf32>
    %40 = math.log %39 : vector<16x1xf32>
    %41 = vector.broadcast %40 : vector<16x1xf32> to vector<16x16xf32>
    %42 = arith.subf %36, %41 : vector<16x16xf32>
    %c0_19 = arith.constant 0 : index
    %c0_20 = arith.constant 0 : index
    %43 = vector.load %arg6[%c0_19, %c0_20] : memref<8x16xf32, #tpu.memory_space<vmem>>, vector<8x16xf32>
    %44 = tpu.concatenate %43, %43 in 0 : vector<8x16xf32>, vector<8x16xf32> -> vector<16x16xf32>
    %45 = arith.mulf %44, %42 : vector<16x16xf32>
    %46 = vector.shape_cast %45 : vector<16x16xf32> to vector<1x16x16xf32>
    %cst_21 = arith.constant dense<0.000000e+00> : vector<1xf32>
    %47 = vector.multi_reduction <add>, %46, %cst_21 [1, 2] : vector<1x16x16xf32> to vector<1xf32>
    %48 = vector.shape_cast %47 : vector<1xf32> to vector<1x1x1xf32>
    %49 = vector.extract %48[0, 0, 0] : f32 from vector<1x1x1xf32>
    %cst_22 = arith.constant 0.000000e+00 : f32
    %50 = arith.subf %cst_22, %49 : f32
    %cst_23 = arith.constant 8.000000e+00 : f32
    %51 = arith.divf %50, %cst_23 : f32
    %52 = arith.mulf %32, %32 : vector<16x16xf32>
    %cst_24 = arith.constant dense<0.000000e+00> : vector<16xf32>
    %53 = vector.multi_reduction <add>, %52, %cst_24 [1] : vector<16x16xf32> to vector<16xf32>
    %54 = vector.shape_cast %53 : vector<16xf32> to vector<16x1xf32>
    %55 = math.sqrt %54 : vector<16x1xf32>
    %cst_25 = arith.constant 9.99999996E-13 : f32
    %56 = vector.broadcast %cst_25 : f32 to vector<16x1xf32>
    %57 = arith.maximumf %55, %56 : vector<16x1xf32>
    %58 = tpu.reciprocal %57 {approx = true} : vector<16x1xf32> -> vector<16x1xf32>
    %59 = vector.broadcast %58 : vector<16x1xf32> to vector<16x16xf32>
    %60 = arith.mulf %32, %59 : vector<16x16xf32>
    %cst_26 = arith.constant dense<0xFF800000> : vector<16xf32>
    %61 = vector.multi_reduction <maximumf>, %60, %cst_26 [1] : vector<16x16xf32> to vector<16xf32>
    %62 = vector.shape_cast %61 : vector<16xf32> to vector<16x1xf32>
    %63 = vector.broadcast %62 : vector<16x1xf32> to vector<16x16xf32>
    %64 = arith.subf %60, %63 : vector<16x16xf32>
    %65 = math.exp %64 : vector<16x16xf32>
    %cst_27 = arith.constant dense<0.000000e+00> : vector<16xf32>
    %66 = vector.multi_reduction <add>, %65, %cst_27 [1] : vector<16x16xf32> to vector<16xf32>
    %67 = vector.shape_cast %66 : vector<16xf32> to vector<16x1xf32>
    %68 = math.log %67 : vector<16x1xf32>
    %69 = vector.broadcast %68 : vector<16x1xf32> to vector<16x16xf32>
    %70 = arith.subf %64, %69 : vector<16x16xf32>
    %71 = vector.extract_strided_slice %70 {offsets = [8, 0], sizes = [8, 16], strides = [1, 1]} : vector<16x16xf32> to vector<8x16xf32>
    %72 = vector.extract_strided_slice %70 {offsets = [0, 0], sizes = [8, 16], strides = [1, 1]} : vector<16x16xf32> to vector<8x16xf32>
    %73 = math.exp %72 : vector<8x16xf32>
    %74 = arith.mulf %71, %73 : vector<8x16xf32>
    %cst_28 = arith.constant dense<0.000000e+00> : vector<8xf32>
    %75 = vector.multi_reduction <add>, %74, %cst_28 [1] : vector<8x16xf32> to vector<8xf32>
    %76 = vector.shape_cast %75 : vector<8xf32> to vector<8x1xf32>
    %77 = vector.shape_cast %76 : vector<8x1xf32> to vector<1x8x1xf32>
    %cst_29 = arith.constant dense<0.000000e+00> : vector<1xf32>
    %78 = vector.multi_reduction <add>, %77, %cst_29 [1, 2] : vector<1x8x1xf32> to vector<1xf32>
    %79 = vector.shape_cast %78 : vector<1xf32> to vector<1x1x1xf32>
    %80 = vector.extract %79[0, 0, 0] : f32 from vector<1x1x1xf32>
    %cst_30 = arith.constant 8.000000e+00 : f32
    %81 = arith.divf %80, %cst_30 : f32
    %cst_31 = arith.constant 0.000000e+00 : f32
    %82 = arith.subf %cst_31, %81 : f32
    %cst_32 = arith.constant 1.000000e+00 : f32
    %83 = arith.mulf %cst_32, %51 : f32
    %cst_33 = arith.constant 5.000000e-01 : f32
    %84 = arith.mulf %cst_33, %82 : f32
    %85 = arith.addf %83, %84 : f32
    %c0_34 = arith.constant 0 : index
    %c0_35 = arith.constant 0 : index
    %86 = vector.load %arg5[%c0_34, %c0_35] : memref<32x16xf32, #tpu.memory_space<vmem>>, vector<32x16xf32>
    %cst_36 = arith.constant dense<0.000000e+00> : vector<8x16xf32>
    %87 = tpu.matmul %29, %86, %cst_36 {dimension_numbers = #tpu.dot_dimension_numbers<[1], [0], [0], [1], [0, 0, 1, 1], [], []>} : vector<8x32xf32>, vector<32x16xf32>, vector<8x16xf32> -> vector<8x16xf32>
    %cst_37 = arith.constant dense<0xFF800000> : vector<8xf32>
    %88 = vector.multi_reduction <maximumf>, %87, %cst_37 [1] : vector<8x16xf32> to vector<8xf32>
    %89 = vector.shape_cast %88 : vector<8xf32> to vector<8x1xf32>
    %90 = vector.broadcast %89 : vector<8x1xf32> to vector<8x16xf32>
    %91 = arith.subf %87, %90 : vector<8x16xf32>
    %92 = math.exp %91 : vector<8x16xf32>
    %cst_38 = arith.constant dense<0.000000e+00> : vector<8xf32>
    %93 = vector.multi_reduction <add>, %92, %cst_38 [1] : vector<8x16xf32> to vector<8xf32>
    %94 = vector.shape_cast %93 : vector<8xf32> to vector<8x1xf32>
    %95 = math.log %94 : vector<8x1xf32>
    %96 = vector.broadcast %95 : vector<8x1xf32> to vector<8x16xf32>
    %97 = arith.subf %91, %96 : vector<8x16xf32>
    %c0_39 = arith.constant 0 : index
    %c0_40 = arith.constant 0 : index
    %98 = vector.load %arg7[%c0_39, %c0_40] : memref<8x16xf32, #tpu.memory_space<vmem>>, vector<8x16xf32>
    %cst_41 = arith.constant dense<0.000000e+00> : vector<8xf32>
    %99 = vector.multi_reduction <add>, %98, %cst_41 [1] : vector<8x16xf32> to vector<8xf32>
    %100 = vector.shape_cast %99 : vector<8xf32> to vector<8x1xf32>
    %cst_42 = arith.constant 1.000000e+00 : f32
    %101 = vector.broadcast %cst_42 : f32 to vector<8x1xf32>
    %102 = arith.maximumf %100, %101 : vector<8x1xf32>
    %103 = arith.mulf %98, %97 : vector<8x16xf32>
    %cst_43 = arith.constant dense<0.000000e+00> : vector<8xf32>
    %104 = vector.multi_reduction <add>, %103, %cst_43 [1] : vector<8x16xf32> to vector<8xf32>
    %105 = vector.shape_cast %104 : vector<8xf32> to vector<8x1xf32>
    %106 = tpu.reciprocal %102 {approx = true} : vector<8x1xf32> -> vector<8x1xf32>
    %107 = arith.mulf %105, %106 : vector<8x1xf32>
    %108 = vector.shape_cast %107 : vector<8x1xf32> to vector<1x8x1xf32>
    %cst_44 = arith.constant dense<0.000000e+00> : vector<1xf32>
    %109 = vector.multi_reduction <add>, %108, %cst_44 [1, 2] : vector<1x8x1xf32> to vector<1xf32>
    %110 = vector.shape_cast %109 : vector<1xf32> to vector<1x1x1xf32>
    %111 = vector.extract %110[0, 0, 0] : f32 from vector<1x1x1xf32>
    %cst_45 = arith.constant 8.000000e+00 : f32
    %112 = arith.divf %111, %cst_45 : f32
    %cst_46 = arith.constant 0.000000e+00 : f32
    %113 = arith.subf %cst_46, %112 : f32
    %cst_47 = arith.constant 5.000000e-01 : f32
    %114 = arith.mulf %cst_47, %113 : f32
    %115 = arith.addf %85, %114 : f32
    %cst_48 = arith.constant 0.000000e+00 : f32
    %116 = vector.broadcast %cst_48 : f32 to vector<8x64xf32>
    %117 = vector.broadcast %115 : f32 to vector<8x64xf32>
    %118 = arith.addf %117, %116 : vector<8x64xf32>
    %119 = tpu.concatenate %21, %29, %118 in 1 : vector<8x32xf32>, vector<8x32xf32>, vector<8x64xf32> -> vector<8x128xf32>
    %c0_49 = arith.constant 0 : index
    %c0_50 = arith.constant 0 : index
    %120 = vector.load %arg8[%c0_49, %c0_50] : memref<8x128xf32, #tpu.memory_space<vmem>>, vector<8x128xf32>
    tpu.vector_store %arg8[%c0_49, %c0_50], %119 {strides = array<i32>} : memref<8x128xf32, #tpu.memory_space<vmem>>, vector<8x128xf32>,
    return
  }
}

</mosaic_0001>

<llo_original>
// kernel: tpu_custom_call.1
$region0: #{tpu_custom_call.1}
  #allocation0 [shape = 'u32[]', space=smem, size = 0x4, offset = 0x4, fixed_abs, tag = 'smem constant byte address 0x4 - core index']
  #allocation1 [shape = 'u32[144,128]{1,0:T(1,128)}', space=vmem, size = 0x12000, scoped, tag = 'internal scratch']
  %s0 = inlined_call_operand.vmem [shape: f32[8,64], index: 0, kind: input, shape index: {}]
  %s1 = inlined_call_operand.vmem [shape: f32[64,64], index: 1, kind: input, shape index: {}]
  %s2 = inlined_call_operand.vmem [shape: f32[64,64], index: 2, kind: input, shape index: {}]
  %s3 = inlined_call_operand.vmem [shape: f32[64,32], index: 3, kind: input, shape index: {}]
  %s4 = inlined_call_operand.hbm [shape: f32[3,64], index: 4, kind: input, shape index: {}]
  %s5 = inlined_call_operand.vmem [shape: f32[32,16], index: 5, kind: input, shape index: {}]
  %s6 = inlined_call_operand.vmem [shape: f32[8,16], index: 6, kind: input, shape index: {}]
  %s7 = inlined_call_operand.vmem [shape: f32[8,16], index: 7, kind: input, shape index: {}]
  %s8 = inlined_call_operand.hbm [shape: f32[8,128], index: 8, kind: output, shape index: {}]
  %s9 = sld [smem:[#allocation0]]
  $region46: #{tpu_custom_call.1} parent=0
    _
  %s11 = ssub.s32 1, %s9
  %s12 = scalar_select 0, %s11, %s9
  $region1: #{tpu_custom_call.1} parent=0
    #allocation2 [shape = 'u8[2048]{0}', space=vmem, size = 0x800, scoped, tag = 'input window, operand 4, single buffered']
    #allocation3 [shape = 's32[1]{0}', space=sflag, size = 0x4, scoped, tag = 'scoped memory for tpu_custom_call.1']
    #allocation4 [shape = 's32[1]{0}', space=sflag, size = 0x4, scoped, tag = 'scoped memory for tpu_custom_call.1']
    #allocation5 [shape = 'u8[4096]{0}', space=vmem, size = 0x1000, scoped, tag = 'output window, operand 0, single buffered']
    %13 = vsyncpa [#allocation3], 0
    %14 = vsyncpa [#allocation4], 0
    // Predicated region
    $region2: #{tpu_custom_call.1} parent=1 // pred_check
      _
    $region3: #{tpu_custom_call.1} parent=1 // pred_check_branch
      %16 = sbr.rel (0) target = $region5
    $region4: #{tpu_custom_call.1} parent=1 // pred_region
      _
    $region5: #{tpu_custom_call.1} parent=1 // pred_fallthru
      _
    // Predicated region
    $region6: #{tpu_custom_call.1} parent=1 // pred_check
      _
    $region7: #{tpu_custom_call.1} parent=1 // pred_check_branch
      %18 = sbr.rel (0) target = $region9
    $region8: #{tpu_custom_call.1} parent=1 // pred_region
      _
    $region9: #{tpu_custom_call.1} parent=1 // pred_fallthru
      _
    // Predicated region
    $region10: #{tpu_custom_call.1} parent=1 // pred_check
      _
    $region11: #{tpu_custom_call.1} parent=1 // pred_check_branch
      %20 = sbr.rel (0) target = $region13
    $region12: #{tpu_custom_call.1} parent=1 // pred_region
      _
    $region13: #{tpu_custom_call.1} parent=1 // pred_fallthru
      _
    // Predicated region
    $region14: #{tpu_custom_call.1} parent=1 // pred_check
      _
    $region15: #{tpu_custom_call.1} parent=1 // pred_check_branch
      %22 = sbr.rel (0) target = $region17
    $region16: #{tpu_custom_call.1} parent=1 // pred_region
      _
    $region17: #{tpu_custom_call.1} parent=1 // pred_fallthru
      _
    // Predicated region
    $region18: #{tpu_custom_call.1} parent=1 // pred_check
      _
    $region19: #{tpu_custom_call.1} parent=1 // pred_check_branch
      %24 = sbr.rel (0) target = $region21
    $region20: #{tpu_custom_call.1} parent=1 // pred_region
      %s26 = ssub.s32 64, 64
      %27 = vsyncadd [#allocation3], %s26
      %s29 = sshll.u32 [#allocation2], 4
      %s30 = int_to_ptr.vmem [resolvable:$true] %s29
      %32 = dma.hbm_to_vmem [thread:$0]  %s4, 64, %s30, [#allocation3]
    $region21: #{tpu_custom_call.1} parent=1 // pred_fallthru
      _
    // Predicated region
    $region22: #{tpu_custom_call.1} parent=1 // pred_check
      _
    $region23: #{tpu_custom_call.1} parent=1 // pred_check_branch
      %34 = sbr.rel (0) target = $region25
    $region24: #{tpu_custom_call.1} parent=1 // pred_region
      _
    $region25: #{tpu_custom_call.1} parent=1 // pred_fallthru
      _
    // Predicated region
    $region26: #{tpu_custom_call.1} parent=1 // pred_check
      _
    $region27: #{tpu_custom_call.1} parent=1 // pred_check_branch
      %36 = sbr.rel (0) target = $region29
    $region28: #{tpu_custom_call.1} parent=1 // pred_region
      _
    $region29: #{tpu_custom_call.1} parent=1 // pred_fallthru
      _
    // Predicated region
    $region30: #{tpu_custom_call.1} parent=1 // pred_check
      _
    $region31: #{tpu_custom_call.1} parent=1 // pred_check_branch
      %38 = sbr.rel (0) target = $region33
    $region32: #{tpu_custom_call.1} parent=1 // pred_region
      _
    $region33: #{tpu_custom_call.1} parent=1 // pred_fallthru
      _
    // Predicated region
    $region34: #{tpu_custom_call.1} parent=1 // pred_check
      _
    $region35: #{tpu_custom_call.1} parent=1 // pred_check_branch
      %40 = sbr.rel (0) target = $region37
    $region36: #{tpu_custom_call.1} parent=1 // pred_region
      %41 = dma.done [#allocation3], 64
    $region37: #{tpu_custom_call.1} parent=1 // pred_fallthru
      _
    %v42 = vld [vmem:[%s0] sm:$0xff]
    %v43 = vld [vmem:[#allocation2] sm:$0x1]
    %v44 = vld [vmem:[#allocation2 + $0x1] sm:$0x1]
    %v45 = vld [vmem:[#allocation2 + $0x2] sm:$0x1]
    %v46 = vld [vmem:[%s1] sm:$0xff]
    %v47 = vld [vmem:[%s1 + $0x8] sm:$0xff]
    %v48 = vld [vmem:[%s1 + $0x10] sm:$0xff]
    %v49 = vld [vmem:[%s1 + $0x18] sm:$0xff]
    %v50 = vld [vmem:[%s1 + $0x20] sm:$0xff]
    %v51 = vld [vmem:[%s1 + $0x28] sm:$0xff]
    %v52 = vld [vmem:[%s1 + $0x30] sm:$0xff]
    %v53 = vld [vmem:[%s1 + $0x38] sm:$0xff]
    %v54 = vlaneseq
    %v55 = vshrl.u32 %v54, 7
    %v56 = vsub.s32 0, %v55
    %v57 = vrot.slane %v43, %v56
    %vm58 = vcmask 523264
    %v60 = vsel %vm58, %v42, 0
    %62 = vmatprep.subr.mxu0 0.0
    %63 = vmatpush1.msra.mxu0 %v46
    %64 = vmatprep.subr.mxu0 0.0
    %65 = vmatpush1.msra.mxu0 %v47
    %66 = vmatprep.subr.mxu0 0.0
    %67 = vmatpush1.msra.mxu0 %v48
    %68 = vmatprep.subr.mxu0 0.0
    %69 = vmatpush1.msra.mxu0 %v49
    %70 = vmatprep.subr.mxu0 0.0
    %71 = vmatpush1.msra.mxu0 %v50
    %72 = vmatprep.subr.mxu0 0.0
    %73 = vmatpush1.msra.mxu0 %v51
    %74 = vmatprep.subr.mxu0 0.0
    %75 = vmatpush1.msra.mxu0 %v52
    %76 = vmatprep.subr.mxu0 0.0
    %77 = vmatpush1.msra.mxu0 %v53
    %78 = vmatprep.subr.mxu0 0.0
    %79 = vmatpush1.msra.mxu0 0.0
    %80 = vmatprep.subr.mxu0 0.0
    %81 = vmatpush1.msra.mxu0 0.0
    %82 = vmatprep.subr.mxu0 0.0
    %83 = vmatpush1.msra.mxu0 0.0
    %84 = vmatprep.subr.mxu0 0.0
    %85 = vmatpush1.msra.mxu0 0.0
    %86 = vmatprep.subr.mxu0 0.0
    %87 = vmatpush1.msra.mxu0 0.0
    %88 = vmatprep.subr.mxu0 0.0
    %89 = vmatpush1.msra.mxu0 0.0
    %90 = vmatprep.subr.mxu0 0.0
    %91 = vmatpush1.msra.mxu0 0.0
    %92 = vmatprep.subr.mxu0 0.0
    %93 = vmatpush1.msra.mxu0 0.0
    %94 = vmatprep.subr.mxu0 0.0
    %95 = vmatpush1.msra.mxu0 0.0
    %96 = vmatprep.subr.mxu0 0.0
    %97 = vmatpush1.msra.mxu0 0.0
    %98 = vmatprep.subr.mxu0 0.0
    %99 = vmatpush1.msra.mxu0 0.0
    %100 = vmatprep.subr.mxu0 0.0
    %101 = vmatpush1.msra.mxu0 0.0
    %102 = vmatprep.subr.mxu0 0.0
    %103 = vmatpush1.msra.mxu0 0.0
    %104 = vmatprep.subr.mxu0 0.0
    %105 = vmatpush1.msra.mxu0 0.0
    %106 = vmatprep.subr.mxu0 0.0
    %107 = vmatpush1.msra.mxu0 0.0
    %108 = vmatprep.subr.mxu0 0.0
    %109 = vmatpush1.msra.mxu0 0.0
    %110 = vmatprep.subr.mxu0 0.0
    %111 = vmatpush1.msra.mxu0 0.0
    %112 = vmatprep.subr.mxu0 0.0
    %113 = vmatpush1.msra.mxu0 0.0
    %114 = vmatprep.subr.mxu0 0.0
    %115 = vmatpush1.msra.mxu0 0.0
    %116 = vmatprep.subr.mxu0 0.0
    %117 = vmatpush1.msra.mxu0 0.0
    %118 = vmatprep.subr.mxu0 0.0
    %119 = vmatpush1.msra.mxu0 0.0
    %120 = vmatprep.subr.mxu0 0.0
    %121 = vmatpush1.msra.mxu0 0.0
    %122 = vmatprep.subr.mxu0 0.0
    %123 = vmatpush1.msra.mxu0 0.0
    %124 = vmatprep.subr.mxu0 0.0
    %125 = vmatpush1.msra.mxu0 0.0
    %126 = vmatprep.mubr.f32.mxu0 0.0
    %127 = vmatmul.mubr.f32.gmra.mrb[0].mxu0 %v60
    %v128 = vpop.f32.mrb[0].mxu0
    %v129 = vadd.f32 %v57, %v128
    %v130 = vpop.f32.mrb[0].mxu0
    %131 = vdwg.mxu0
    %vm132 = vcmp.gt.f32.partialorder %v129, 0.0
    %v133 = vmul.f32 %v129, 0.2
    %v134 = vsel %vm132, %v129, %v133
    %v135 = vld [vmem:[%s2] sm:$0xff]
    %v136 = vld [vmem:[%s2 + $0x8] sm:$0xff]
    %v137 = vld [vmem:[%s2 + $0x10] sm:$0xff]
    %v138 = vld [vmem:[%s2 + $0x18] sm:$0xff]
    %v139 = vld [vmem:[%s2 + $0x20] sm:$0xff]
    %v140 = vld [vmem:[%s2 + $0x28] sm:$0xff]
    %v141 = vld [vmem:[%s2 + $0x30] sm:$0xff]
    %v142 = vld [vmem:[%s2 + $0x38] sm:$0xff]
    %v143 = vlaneseq
    %v144 = vshrl.u32 %v143, 7
    %v145 = vsub.s32 0, %v144
    %v146 = vrot.slane %v44, %v145
    %v148 = vsel %vm58, %v134, 0
    %150 = vmatprep.subr.mxu0 0.0
    %151 = vmatpush1.msra.mxu0 %v135
    %152 = vmatprep.subr.mxu0 0.0
    %153 = vmatpush1.msra.mxu0 %v136
    %154 = vmatprep.subr.mxu0 0.0
    %155 = vmatpush1.msra.mxu0 %v137
    %156 = vmatprep.subr.mxu0 0.0
    %157 = vmatpush1.msra.mxu0 %v138
    %158 = vmatprep.subr.mxu0 0.0
    %159 = vmatpush1.msra.mxu0 %v139
    %160 = vmatprep.subr.mxu0 0.0
    %161 = vmatpush1.msra.mxu0 %v140
    %162 = vmatprep.subr.mxu0 0.0
    %163 = vmatpush1.msra.mxu0 %v141
    %164 = vmatprep.subr.mxu0 0.0
    %165 = vmatpush1.msra.mxu0 %v142
    %166 = vmatprep.subr.mxu0 0.0
    %167 = vmatpush1.msra.mxu0 0.0
    %168 = vmatprep.subr.mxu0 0.0
    %169 = vmatpush1.msra.mxu0 0.0
    %170 = vmatprep.subr.mxu0 0.0
    %171 = vmatpush1.msra.mxu0 0.0
    %172 = vmatprep.subr.mxu0 0.0
    %173 = vmatpush1.msra.mxu0 0.0
    %174 = vmatprep.subr.mxu0 0.0
    %175 = vmatpush1.msra.mxu0 0.0
    %176 = vmatprep.subr.mxu0 0.0
    %177 = vmatpush1.msra.mxu0 0.0
    %178 = vmatprep.subr.mxu0 0.0
    %179 = vmatpush1.msra.mxu0 0.0
    %180 = vmatprep.subr.mxu0 0.0
    %181 = vmatpush1.msra.mxu0 0.0
    %182 = vmatprep.subr.mxu0 0.0
    %183 = vmatpush1.msra.mxu0 0.0
    %184 = vmatprep.subr.mxu0 0.0
    %185 = vmatpush1.msra.mxu0 0.0
    %186 = vmatprep.subr.mxu0 0.0
    %187 = vmatpush1.msra.mxu0 0.0
    %188 = vmatprep.subr.mxu0 0.0
    %189 = vmatpush1.msra.mxu0 0.0
    %190 = vmatprep.subr.mxu0 0.0
    %191 = vmatpush1.msra.mxu0 0.0
    %192 = vmatprep.subr.mxu0 0.0
    %193 = vmatpush1.msra.mxu0 0.0
    %194 = vmatprep.subr.mxu0 0.0
    %195 = vmatpush1.msra.mxu0 0.0
    %196 = vmatprep.subr.mxu0 0.0
    %197 = vmatpush1.msra.mxu0 0.0
    %198 = vmatprep.subr.mxu0 0.0
    %199 = vmatpush1.msra.mxu0 0.0
    %200 = vmatprep.subr.mxu0 0.0
    %201 = vmatpush1.msra.mxu0 0.0
    %202 = vmatprep.subr.mxu0 0.0
    %203 = vmatpush1.msra.mxu0 0.0
    %204 = vmatprep.subr.mxu0 0.0
    %205 = vmatpush1.msra.mxu0 0.0
    %206 = vmatprep.subr.mxu0 0.0
    %207 = vmatpush1.msra.mxu0 0.0
    %208 = vmatprep.subr.mxu0 0.0
    %209 = vmatpush1.msra.mxu0 0.0
    %210 = vmatprep.subr.mxu0 0.0
    %211 = vmatpush1.msra.mxu0 0.0
    %212 = vmatprep.subr.mxu0 0.0
    %213 = vmatpush1.msra.mxu0 0.0
    %214 = vmatprep.mubr.f32.mxu0 0.0
    %215 = vmatmul.mubr.f32.gmra.mrb[0].mxu0 %v148
    %v216 = vpop.f32.mrb[0].mxu0
    %v217 = vadd.f32 %v146, %v216
    %v218 = vpop.f32.mrb[0].mxu0
    %219 = vdwg.mxu0
    %v220 = vld [vmem:[%s3] sm:$0xff]
    %v221 = vld [vmem:[%s3 + $0x8] sm:$0xff]
    %v222 = vld [vmem:[%s3 + $0x10] sm:$0xff]
    %v223 = vld [vmem:[%s3 + $0x18] sm:$0xff]
    %v224 = vld [vmem:[%s3 + $0x20] sm:$0xff]
    %v225 = vld [vmem:[%s3 + $0x28] sm:$0xff]
    %v226 = vld [vmem:[%s3 + $0x30] sm:$0xff]
    %v227 = vld [vmem:[%s3 + $0x38] sm:$0xff]
    %v228 = vlaneseq
    %v229 = vshrl.u32 %v228, 7
    %v230 = vsub.s32 0, %v229
    %v231 = vrot.slane %v45, %v230
    %v233 = vsel %vm58, %v217, 0
    %235 = vmatprep.subr.mxu0 0.0
    %236 = vmatpush1.msra.mxu0 %v220
    %237 = vmatprep.subr.mxu0 0.0
    %238 = vmatpush1.msra.mxu0 %v221
    %239 = vmatprep.subr.mxu0 0.0
    %240 = vmatpush1.msra.mxu0 %v222
    %241 = vmatprep.subr.mxu0 0.0
    %242 = vmatpush1.msra.mxu0 %v223
    %243 = vmatprep.subr.mxu0 0.0
    %244 = vmatpush1.msra.mxu0 %v224
    %245 = vmatprep.subr.mxu0 0.0
    %246 = vmatpush1.msra.mxu0 %v225
    %247 = vmatprep.subr.mxu0 0.0
    %248 = vmatpush1.msra.mxu0 %v226
    %249 = vmatprep.subr.mxu0 0.0
    %250 = vmatpush1.msra.mxu0 %v227
    %251 = vmatprep.subr.mxu0 0.0
    %252 = vmatpush1.msra.mxu0 0.0
    %253 = vmatprep.subr.mxu0 0.0
    %254 = vmatpush1.msra.mxu0 0.0
    %255 = vmatprep.subr.mxu0 0.0
    %256 = vmatpush1.msra.mxu0 0.0
    %257 = vmatprep.subr.mxu0 0.0
    %258 = vmatpush1.msra.mxu0 0.0
    %259 = vmatprep.subr.mxu0 0.0
    %260 = vmatpush1.msra.mxu0 0.0
    %261 = vmatprep.subr.mxu0 0.0
    %262 = vmatpush1.msra.mxu0 0.0
    %263 = vmatprep.subr.mxu0 0.0
    %264 = vmatpush1.msra.mxu0 0.0
    %265 = vmatprep.subr.mxu0 0.0
    %266 = vmatpush1.msra.mxu0 0.0
    %267 = vmatprep.subr.mxu0 0.0
    %268 = vmatpush1.msra.mxu0 0.0
    %269 = vmatprep.subr.mxu0 0.0
    %270 = vmatpush1.msra.mxu0 0.0
    %271 = vmatprep.subr.mxu0 0.0
    %272 = vmatpush1.msra.mxu0 0.0
    %273 = vmatprep.subr.mxu0 0.0
    %274 = vmatpush1.msra.mxu0 0.0
    %275 = vmatprep.subr.mxu0 0.0
    %276 = vmatpush1.msra.mxu0 0.0
    %277 = vmatprep.subr.mxu0 0.0
    %278 = vmatpush1.msra.mxu0 0.0
    %279 = vmatprep.subr.mxu0 0.0
    %280 = vmatpush1.msra.mxu0 0.0
    %281 = vmatprep.subr.mxu0 0.0
    %282 = vmatpush1.msra.mxu0 0.0
    %283 = vmatprep.subr.mxu0 0.0
    %284 = vmatpush1.msra.mxu0 0.0
    %285 = vmatprep.subr.mxu0 0.0
    %286 = vmatpush1.msra.mxu0 0.0
    %287 = vmatprep.subr.mxu0 0.0
    %288 = vmatpush1.msra.mxu0 0.0
    %289 = vmatprep.subr.mxu0 0.0
    %290 = vmatpush1.msra.mxu0 0.0
    %291 = vmatprep.subr.mxu0 0.0
    %292 = vmatpush1.msra.mxu0 0.0
    %293 = vmatprep.subr.mxu0 0.0
    %294 = vmatpush1.msra.mxu0 0.0
    %295 = vmatprep.subr.mxu0 0.0
    %296 = vmatpush1.msra.mxu0 0.0
    %297 = vmatprep.subr.mxu0 0.0
    %298 = vmatpush1.msra.mxu0 0.0
    %299 = vmatprep.mubr.f32.mxu0 0.0
    %300 = vmatmul.mubr.f32.gmra.mrb[0].mxu0 %v233
    %v301 = vpop.f32.mrb[0].mxu0
    %v302 = vadd.f32 %v231, %v301
    %v303 = vpop.f32.mrb[0].mxu0
    %304 = vdwg.mxu0
    %v305 = vmul.f32 %v217, %v217
    %307 = vrot.lane.b32.xlu0 %v305, 96
    %v308 = vpop.permute.xlu0 %307
    %vm310 = vcmask 261120
    %v311 = vsel %vm310, %v308, 0.0
    %312 = vadd.xlane.f32.xlu0 %v311
    %v313 = vpop.xlane.xlu0 %312
    %v314 = vrsqrt.pop %v313
    %v315 = vmul.f32 %v313, %v314
    %vm316 = vcmp.eq.f32.partialorder %v313, inf
    %v317 = vsel %vm316, %v313, %v315
    %vm318 = vcmp.eq.f32.partialorder %v313, 0.0
    %v319 = vand.u32 %v313, 2147483648
    %v320 = vsel %vm318, %v319, %v317
    %v321 = vmax.f32 %v320, 1e-12
    %v322 = vrcp.pop %v321
    %v323 = vmul.f32 %v217, %v322
    %325 = vrot.lane.b32.xlu0 %v302, 112
    %v326 = vpop.permute.xlu0 %325
    %vm328 = vcmask 130048
    %v329 = vsel %vm328, %v302, -inf
    %330 = vmax.xlane.f32.xlu0 %v329
    %v331 = vpop.xlane.xlu0 %330
    %v332 = vsel %vm328, %v326, -inf
    %333 = vmax.xlane.f32.xlu0 %v332
    %v334 = vpop.xlane.xlu0 %333
    %v335 = vsub.f32 %v302, %v331
    %v336 = vsub.f32 %v326, %v334
    %v337 = vmul.f32 %v335, 1.442695
    %v338 = vpow.pop %v337
    %v339 = vmul.f32 %v336, 1.442695
    %v340 = vpow.pop %v339
    %v341 = vsel %vm328, %v338, 0.0
    %342 = vadd.xlane.f32.xlu0 %v341
    %v343 = vpop.xlane.xlu0 %342
    %v344 = vsel %vm328, %v340, 0.0
    %345 = vadd.xlane.f32.xlu0 %v344
    %v346 = vpop.xlane.xlu0 %345
    %v347 = vlog2.pop %v343
    %v348 = vmul.f32 %v347, 0.6931472
    %v349 = vlog2.pop %v346
    %v350 = vmul.f32 %v349, 0.6931472
    %v351 = vsub.f32 %v335, %v348
    %v352 = vsub.f32 %v336, %v350
    %v353 = vld [vmem:[%s6] sm:$0xff]
    %v354 = vmul.f32 %v353, %v351
    %v355 = vmul.f32 %v353, %v352
    %v356 = vsel %vm328, %v354, 0.0
    %v357 = vsel %vm328, %v355, 0.0
    %v358 = vadd.f32 %v356, %v357
    %359 = vadd.xlane.f32.xlu0 %v358
    %v360 = vpop.xlane.xlu0 %359
    %v361 = vrot.slane %v360, 4
    %v362 = vadd.f32 %v360, %v361
    %v363 = vrot.slane %v362, 2
    %v364 = vadd.f32 %v362, %v363
    %v365 = vrot.slane %v364, 1
    %v366 = vadd.f32 %v364, %v365
    %s367 = vtos %v366
    %s368 = ssub.f32 0.0, %s367
    %v369 = vrcp.pop 8.0
    %s370 = vtos %v369
    %s371 = smul.f32 %s368, %s370
    %v372 = vmul.f32 %v302, %v302
    %v373 = vmul.f32 %v326, %v326
    %v374 = vsel %vm328, %v372, 0.0
    %375 = vadd.xlane.f32.xlu0 %v374
    %v376 = vpop.xlane.xlu0 %375
    %v377 = vsel %vm328, %v373, 0.0
    %378 = vadd.xlane.f32.xlu0 %v377
    %v379 = vpop.xlane.xlu0 %378
    %v380 = vrsqrt.pop %v376
    %v381 = vmul.f32 %v376, %v380
    %vm382 = vcmp.eq.f32.partialorder %v376, inf
    %v383 = vsel %vm382, %v376, %v381
    %vm384 = vcmp.eq.f32.partialorder %v376, 0.0
    %v385 = vand.u32 %v376, 2147483648
    %v386 = vsel %vm384, %v385, %v383
    %v387 = vrsqrt.pop %v379
    %v388 = vmul.f32 %v379, %v387
    %vm389 = vcmp.eq.f32.partialorder %v379, inf
    %v390 = vsel %vm389, %v379, %v388
    %vm391 = vcmp.eq.f32.partialorder %v379, 0.0
    %v392 = vand.u32 %v379, 2147483648
    %v393 = vsel %vm391, %v392, %v390
    %v394 = vmax.f32 %v386, 1e-12
    %v395 = vmax.f32 %v393, 1e-12
    %v396 = vrcp.pop %v394
    %v397 = vrcp.pop %v395
    %v398 = vmul.f32 %v302, %v396
    %v399 = vmul.f32 %v326, %v397
    %v400 = vsel %vm328, %v398, -inf
    %401 = vmax.xlane.f32.xlu0 %v400
    %v402 = vpop.xlane.xlu0 %401
    %v403 = vsel %vm328, %v399, -inf
    %404 = vmax.xlane.f32.xlu0 %v403
    %v405 = vpop.xlane.xlu0 %404
    %v406 = vsub.f32 %v398, %v402
    %v407 = vsub.f32 %v399, %v405
    %v408 = vmul.f32 %v406, 1.442695
    %v409 = vpow.pop %v408
    %v410 = vmul.f32 %v407, 1.442695
    %v411 = vpow.pop %v410
    %v412 = vsel %vm328, %v409, 0.0
    %413 = vadd.xlane.f32.xlu0 %v412
    %v414 = vpop.xlane.xlu0 %413
    %v415 = vsel %vm328, %v411, 0.0
    %416 = vadd.xlane.f32.xlu0 %v415
    %v417 = vpop.xlane.xlu0 %416
    %v418 = vlog2.pop %v414
    %v419 = vmul.f32 %v418, 0.6931472
    %v420 = vlog2.pop %v417
    %v421 = vmul.f32 %v420, 0.6931472
    %v422 = vsub.f32 %v406, %v419
    %v423 = vsub.f32 %v407, %v421
    %v424 = vmul.f32 %v422, 1.442695
    %v425 = vpow.pop %v424
    %v426 = vmul.f32 %v423, %v425
    %v427 = vsel %vm328, %v426, 0.0
    %428 = vadd.xlane.f32.xlu0 %v427
    %v429 = vpop.xlane.xlu0 %428
    %vm430 = vcmask 7168
    %v431 = vsel %vm430, %v429, 0.0
    %432 = vadd.xlane.f32.xlu0 %v431
    %v433 = vpop.xlane.xlu0 %432
    %v434 = vrot.slane %v433, 4
    %v435 = vadd.f32 %v433, %v434
    %v436 = vrot.slane %v435, 2
    %v437 = vadd.f32 %v435, %v436
    %v438 = vrot.slane %v437, 1
    %v439 = vadd.f32 %v437, %v438
    %s440 = vtos %v439
    %v441 = vrcp.pop 8.0
    %s442 = vtos %v441
    %s443 = smul.f32 %s440, %s442
    %s444 = ssub.f32 0.0, %s443
    %s445 = smul.f32 %s444, 0.5
    %s446 = sadd.f32 %s371, %s445
    %v447 = vld [vmem:[%s5] sm:$0xff]
    %v448 = vld [vmem:[%s5 + $0x8] sm:$0xff]
    %v449 = vld [vmem:[%s5 + $0x10] sm:$0xff]
    %v450 = vld [vmem:[%s5 + $0x18] sm:$0xff]
    %452 = vrot.lane.b32.xlu0 %v323, 96
    %v453 = vpop.permute.xlu0 %452
    %v454 = vsel %vm310, %v453, 0
    %456 = vmatprep.subr.mxu0 0.0
    %457 = vmatpush1.msra.mxu0 %v447
    %458 = vmatprep.subr.mxu0 0.0
    %459 = vmatpush1.msra.mxu0 %v448
    %460 = vmatprep.subr.mxu0 0.0
    %461 = vmatpush1.msra.mxu0 %v449
    %462 = vmatprep.subr.mxu0 0.0
    %463 = vmatpush1.msra.mxu0 %v450
    %464 = vmatprep.subr.mxu0 0.0
    %465 = vmatpush1.msra.mxu0 0.0
    %466 = vmatprep.subr.mxu0 0.0
    %467 = vmatpush1.msra.mxu0 0.0
    %468 = vmatprep.subr.mxu0 0.0
    %469 = vmatpush1.msra.mxu0 0.0
    %470 = vmatprep.subr.mxu0 0.0
    %471 = vmatpush1.msra.mxu0 0.0
    %472 = vmatprep.subr.mxu0 0.0
    %473 = vmatpush1.msra.mxu0 0.0
    %474 = vmatprep.subr.mxu0 0.0
    %475 = vmatpush1.msra.mxu0 0.0
    %476 = vmatprep.subr.mxu0 0.0
    %477 = vmatpush1.msra.mxu0 0.0
    %478 = vmatprep.subr.mxu0 0.0
    %479 = vmatpush1.msra.mxu0 0.0
    %480 = vmatprep.subr.mxu0 0.0
    %481 = vmatpush1.msra.mxu0 0.0
    %482 = vmatprep.subr.mxu0 0.0
    %483 = vmatpush1.msra.mxu0 0.0
    %484 = vmatprep.subr.mxu0 0.0
    %485 = vmatpush1.msra.mxu0 0.0
    %486 = vmatprep.subr.mxu0 0.0
    %487 = vmatpush1.msra.mxu0 0.0
    %488 = vmatprep.subr.mxu0 0.0
    %489 = vmatpush1.msra.mxu0 0.0
    %490 = vmatprep.subr.mxu0 0.0
    %491 = vmatpush1.msra.mxu0 0.0
    %492 = vmatprep.subr.mxu0 0.0
    %493 = vmatpush1.msra.mxu0 0.0
    %494 = vmatprep.subr.mxu0 0.0
    %495 = vmatpush1.msra.mxu0 0.0
    %496 = vmatprep.subr.mxu0 0.0
    %497 = vmatpush1.msra.mxu0 0.0
    %498 = vmatprep.subr.mxu0 0.0
    %499 = vmatpush1.msra.mxu0 0.0
    %500 = vmatprep.subr.mxu0 0.0
    %501 = vmatpush1.msra.mxu0 0.0
    %502 = vmatprep.subr.mxu0 0.0
    %503 = vmatpush1.msra.mxu0 0.0
    %504 = vmatprep.subr.mxu0 0.0
    %505 = vmatpush1.msra.mxu0 0.0
    %506 = vmatprep.subr.mxu0 0.0
    %507 = vmatpush1.msra.mxu0 0.0
    %508 = vmatprep.subr.mxu0 0.0
    %509 = vmatpush1.msra.mxu0 0.0
    %510 = vmatprep.subr.mxu0 0.0
    %511 = vmatpush1.msra.mxu0 0.0
    %512 = vmatprep.subr.mxu0 0.0
    %513 = vmatpush1.msra.mxu0 0.0
    %514 = vmatprep.subr.mxu0 0.0
    %515 = vmatpush1.msra.mxu0 0.0
    %516 = vmatprep.subr.mxu0 0.0
    %517 = vmatpush1.msra.mxu0 0.0
    %518 = vmatprep.subr.mxu0 0.0
    %519 = vmatpush1.msra.mxu0 0.0
    %520 = vmatprep.mubr.f32.mxu0 0.0
    %521 = vmatmul.mubr.f32.gmra.mrb[0].mxu0 %v454
    %v522 = vpop.f32.mrb[0].mxu0
    %v523 = vadd.f32 0.0, %v522
    %v524 = vpop.f32.mrb[0].mxu0
    %525 = vdwg.mxu0
    %v526 = vsel %vm328, %v523, -inf
    %527 = vmax.xlane.f32.xlu0 %v526
    %v528 = vpop.xlane.xlu0 %527
    %v529 = vsub.f32 %v523, %v528
    %v530 = vmul.f32 %v529, 1.442695
    %v531 = vpow.pop %v530
    %v532 = vsel %vm328, %v531, 0.0
    %533 = vadd.xlane.f32.xlu0 %v532
    %v534 = vpop.xlane.xlu0 %533
    %v535 = vlog2.pop %v534
    %v536 = vmul.f32 %v535, 0.6931472
    %v537 = vsub.f32 %v529, %v536
    %v538 = vld [vmem:[%s7] sm:$0xff]
    %v539 = vsel %vm328, %v538, 0.0
    %540 = vadd.xlane.f32.xlu0 %v539
    %v541 = vpop.xlane.xlu0 %540
    %v542 = vmax.f32 %v541, 1.0
    %v543 = vmul.f32 %v538, %v537
    %v544 = vsel %vm328, %v543, 0.0
    %545 = vadd.xlane.f32.xlu0 %v544
    %v546 = vpop.xlane.xlu0 %545
    %v547 = vrcp.pop %v542
    %v548 = vmul.f32 %v546, %v547
    %v549 = vsel %vm430, %v548, 0.0
    %550 = vadd.xlane.f32.xlu0 %v549
    %v551 = vpop.xlane.xlu0 %550
    %v552 = vrot.slane %v551, 4
    %v553 = vadd.f32 %v551, %v552
    %v554 = vrot.slane %v553, 2
    %v555 = vadd.f32 %v553, %v554
    %v556 = vrot.slane %v555, 1
    %v557 = vadd.f32 %v555, %v556
    %s558 = vtos %v557
    %v559 = vrcp.pop 8.0
    %s560 = vtos %v559
    %s561 = smul.f32 %s558, %s560
    %s562 = ssub.f32 0.0, %s561
    %s563 = smul.f32 %s562, 0.5
    %s564 = sadd.f32 %s446, %s563
    %v565 = vstv %s564
    %v566 = vadd.f32 %v565, 0.0
    %567 = vrot.lane.b32.xlu0 %v217, 96
    %v568 = vpop.permute.xlu0 %567
    %v570 = vsel %vm310, %v568, %v323
    %v571 = vsel %vm58, %v570, %v566
    %572 = vst [vmem:[#allocation5] sm:$0xff] %v571
    // Predicated region
    $region38: #{tpu_custom_call.1} parent=1 // pred_check
      _
    $region39: #{tpu_custom_call.1} parent=1 // pred_check_branch
      %574 = sbr.rel (0) target = $region41
    $region40: #{tpu_custom_call.1} parent=1 // pred_region
      %s576 = ssub.s32 128, 128
      %577 = vsyncadd [#allocation4], %s576
      %s579 = sshll.u32 [#allocation5], 4
      %s580 = int_to_ptr.vmem [resolvable:$true] %s579
      %582 = dma.vmem_to_hbm [thread:$0]  %s580, 128, %s8, [#allocation4]
    $region41: #{tpu_custom_call.1} parent=1 // pred_fallthru
      _
    // Predicated region
    $region42: #{tpu_custom_call.1} parent=1 // pred_check
      _
    $region43: #{tpu_custom_call.1} parent=1 // pred_check_branch
      %584 = sbr.rel (0) target = $region45
    $region44: #{tpu_custom_call.1} parent=1 // pred_region
      %585 = dma.done [#allocation4], 128
    $region45: #{tpu_custom_call.1} parent=1 // pred_fallthru
      _
    %586 = vsyncpa [#allocation3], 1
    %587 = vsyncpa [#allocation4], 1

</llo_original>
